<compile_context>
chip_gen: v5e
topology: v5e:2x2
jax: 0.10.0
libtpu: 0.0.40
codegen_flags: <defaults>
</compile_context>

<pallas_src>
import functools

import jax
import jax.numpy as jnp
from jax.experimental import pallas as pl
from jax.experimental.pallas import tpu as pltpu

_LANE = 128
_SUBLANE = 8
_NEG_FILL = -1e30  # bias for padded logit columns -> exp() underflows to 0
_TILE_B_CAP = 1024
_NUM_CORES = 2     # v7x TensorCores per chip; harmless on v5e/v6e


def _round_up(x, m):
    return ((x + m - 1) // m) * m


def _choose_tile_b(batch, *, cap=_TILE_B_CAP, num_cores=_NUM_CORES):
    """Pick a batch tile: big (amortize per-step overhead), even grid for v7x."""
    batch_s = _round_up(batch, _SUBLANE)
    if batch_s <= 4 * _SUBLANE:          # tiny batch: one grid step wins
        return batch_s
    # Smallest tile count that (a) keeps tile_b <= cap and (b) is a multiple
    # of the TensorCore count so the "parallel" grid splits evenly on v7x.
    n_tiles = num_cores * pl.cdiv(pl.cdiv(batch_s, cap), num_cores)
    return _round_up(pl.cdiv(batch_s, n_tiles), _SUBLANE)


# ----------------------------- Pallas kernel -------------------------------

def predictor_kernel(x_ref, w1_ref, b1_ref, w2_ref, b2_ref, w3_ref, b3_ref,
                     out_ref, *, matmul_dtype):
    """One batch tile: 3 matmuls + ReLUs + numerically stable log-softmax."""

    def mm(a, w_ref):
        # MXU matmul; operands in matmul_dtype (bf16 default), accumulate f32.
        return jnp.dot(a.astype(matmul_dtype), w_ref[...],
                       preferred_element_type=jnp.float32)

    # Layer 0: Linear(d_latent, d_hidden) + ReLU  (x already matmul_dtype)
    h = jnp.maximum(mm(x_ref[...], w1_ref) + b1_ref[...], 0.0)

    # Layer 1: Linear(d_hidden, d_hidden) + ReLU   (n_layers_predictor == 2)
    h = jnp.maximum(mm(h, w2_ref) + b2_ref[...], 0.0)

    # Output layer: Linear(d_hidden, n_outputs); padded columns carry a -1e30
    # bias so they contribute nothing to the softmax sum.
    logits = mm(h, w3_ref) + b3_ref[...]

    # LogSoftmax along the feature (lane) axis, max-shifted for stability.
    m = jnp.max(logits, axis=-1, keepdims=True)
    shifted = logits - m
    lse = jnp.log(jnp.sum(jnp.exp(shifted), axis=-1, keepdims=True))
    out_ref[...] = (shifted - lse).astype(out_ref.dtype)


# ------------------------------- wrapper ------------------------------------

def predictor_forward(x, w1, b1, w2, b2, w3, b3, *, tile_b=None,
                      matmul_dtype=None, out_dtype=jnp.float32,
                      return_padded=False):
    """log_softmax(relu(relu(x@w1+b1)@w2+b2)@w3+b3, axis=1).

    Weights are (in_features, out_features); biases are (d,) or (1, d).
    matmul_dtype=None -> bf16 operands (MXU-native on v5e/v6e/v7x) with f32
    accumulation; pass jnp.float32 for strict-accuracy callers.
    return_padded=True returns the (batch_p, n_out_p) buffer (padded cols hold
    ~-1e30, padded rows are log-softmax of the biases); the caller must slice.
    """
    if matmul_dtype is None:
        matmul_dtype = jnp.bfloat16

    batch, d_latent = x.shape
    d_hidden = w1.shape[1]
    n_outputs = w3.shape[1]

    # Lane-dense padded widths (trace-time, free relative to the matmuls).
    d_hidden_p = _round_up(d_hidden, _LANE)
    n_out_p = _round_up(n_outputs, _LANE)

    if tile_b is None:
        tile_b = _choose_tile_b(batch)
    else:
        # Sublane-divisibility: tile_b must be a multiple of 8 once the batch
        # spans more than one tile.
        tile_b = _round_up(int(tile_b), _SUBLANE)
    batch_p = _round_up(batch, tile_b)

    def pad2(a, rows, cols, fill=0.0):
        a = a.reshape((-1, a.shape[-1])) if a.ndim == 1 else a
        return jnp.pad(a, ((0, rows - a.shape[0]), (0, cols - a.shape[1])),
                       constant_values=fill)

    # x cast to matmul_dtype at the wrapper: halves streaming DMA bytes when
    # bf16 and removes a per-tile VPU astype in the kernel.
    xp = pad2(x, batch_p, d_latent).astype(matmul_dtype)
    w1p = pad2(w1, d_latent, d_hidden_p).astype(matmul_dtype)
    b1p = pad2(jnp.reshape(b1, (1, -1)), 1, d_hidden_p).astype(jnp.float32)
    w2p = pad2(w2, d_hidden_p, d_hidden_p).astype(matmul_dtype)
    b2p = pad2(jnp.reshape(b2, (1, -1)), 1, d_hidden_p).astype(jnp.float32)
    w3p = pad2(w3, d_hidden_p, n_out_p).astype(matmul_dtype)
    b3p = pad2(jnp.reshape(b3, (1, -1)), 1, n_out_p,
               fill=_NEG_FILL).astype(jnp.float32)

    grid = (batch_p // tile_b,)

    # Advisory cost hint so XLA can schedule/overlap this small custom call.
    flops = 2 * batch_p * (d_latent * d_hidden_p
                           + d_hidden_p * d_hidden_p
                           + d_hidden_p * n_out_p)
    transcendentals = batch_p * (n_out_p + 1)            # exp per logit + log
    weight_bytes = sum(int(a.size) * a.dtype.itemsize
                       for a in (w1p, b1p, w2p, b2p, w3p, b3p))
    bytes_accessed = (int(xp.size) * xp.dtype.itemsize + weight_bytes
                      + batch_p * n_out_p * jnp.dtype(out_dtype).itemsize)
    cost = pl.CostEstimate(flops=flops, transcendentals=transcendentals,
                           bytes_accessed=bytes_accessed)

    # Weights/biases: constant index_map -> DMA'd once, VMEM-resident across
    # all batch tiles.  x/out stream through the pipeline.
    resident = lambda i: (0, 0)
    out_padded = pl.pallas_call(
        functools.partial(predictor_kernel, matmul_dtype=matmul_dtype),
        out_shape=jax.ShapeDtypeStruct((batch_p, n_out_p), out_dtype),
        grid=grid,
        in_specs=[
            pl.BlockSpec((tile_b, d_latent), lambda i: (i, 0)),
            pl.BlockSpec((d_latent, d_hidden_p), resident),
            pl.BlockSpec((1, d_hidden_p), resident),
            pl.BlockSpec((d_hidden_p, d_hidden_p), resident),
            pl.BlockSpec((1, d_hidden_p), resident),
            pl.BlockSpec((d_hidden_p, n_out_p), resident),
            pl.BlockSpec((1, n_out_p), resident),
        ],
        out_specs=pl.BlockSpec((tile_b, n_out_p), lambda i: (i, 0)),
        compiler_params=pltpu.CompilerParams(
            dimension_semantics=("parallel",)),
        cost_estimate=cost,
    )(xp, w1p, b1p, w2p, b2p, w3p, b3p)

    if return_padded:
        return out_padded
    # NOTE: this slice is a separate XLA copy kernel; prefer return_padded=True
    # (or fuse the slice into the consumer) in deployment.
    return out_padded[:batch, :n_outputs]


# ------------------------------ reference ----------------------------------

def predictor_reference(x, w1, b1, w2, b2, w3, b3):
    h = jnp.maximum(x @ w1 + b1, 0.0)
    h = jnp.maximum(h @ w2 + b2, 0.0)
    logits = h @ w3 + b3
    return jax.nn.log_softmax(logits, axis=1)


# -------------------------------- main --------------------------------------

if __name__ == "__main__":
    # config equivalent: d_latent=32, d_pred_hidden=32, n_outputs=8,
    # n_layers_predictor=2
    batch = 8
    d_latent = 32
    d_hidden = 32
    n_outputs = 8

    key = jax.random.PRNGKey(0)
    kx, k1, k2, k3, kb1, kb2, kb3 = jax.random.split(key, 7)

    x = jax.random.normal(kx, (batch, d_latent), dtype=jnp.float32)

    # Deterministic synthetic parameter init (scaled like nn.Linear's fan-in).
    w1 = jax.random.uniform(k1, (d_latent, d_hidden), jnp.float32,
                            -1.0, 1.0) / jnp.sqrt(d_latent)
    b1 = (jax.random.uniform(kb1, (1, d_hidden), jnp.float32, -1.0, 1.0)
          / jnp.sqrt(d_latent))
    w2 = jax.random.uniform(k2, (d_hidden, d_hidden), jnp.float32,
                            -1.0, 1.0) / jnp.sqrt(d_hidden)
    b2 = (jax.random.uniform(kb2, (1, d_hidden), jnp.float32, -1.0, 1.0)
          / jnp.sqrt(d_hidden))
    w3 = jax.random.uniform(k3, (d_hidden, n_outputs), jnp.float32,
                            -1.0, 1.0) / jnp.sqrt(d_hidden)
    b3 = (jax.random.uniform(kb3, (1, n_outputs), jnp.float32, -1.0, 1.0)
          / jnp.sqrt(d_hidden))

    # --- 1) strict f32 path, small batch (single grid step) ----------------
    out = predictor_forward(x, w1, b1, w2, b2, w3, b3,
                            matmul_dtype=jnp.float32)
    out = jax.block_until_ready(out)
    ref = predictor_reference(x, w1, b1, w2, b2, w3, b3)
    assert out.shape == (batch, n_outputs)
    assert jnp.allclose(out, ref, atol=1e-5, rtol=1e-5), (
        f"max abs err = {jnp.max(jnp.abs(out - ref))}")

    # --- 2) strict f32 path, ragged batch -> even grid (2 tiles of 152) ----
    big_batch = 300
    xb = jax.random.normal(jax.random.PRNGKey(1), (big_batch, d_latent),
                           dtype=jnp.float32)
    out_b = predictor_forward(xb, w1, b1, w2, b2, w3, b3,
                              matmul_dtype=jnp.float32)
    out_b = jax.block_until_ready(out_b)
    ref_b = predictor_reference(xb, w1, b1, w2, b2, w3, b3)
    assert out_b.shape == (big_batch, n_outputs)
    assert jnp.allclose(out_b, ref_b, atol=1e-5, rtol=1e-5), (
        f"max abs err (batched) = {jnp.max(jnp.abs(out_b - ref_b))}")

    # --- 3) default path: bf16 operands, f32 accumulate --------------------
    out_bf = predictor_forward(xb, w1, b1, w2, b2, w3, b3)
    out_bf = jax.block_until_ready(out_bf)
    assert out_bf.shape == (big_batch, n_outputs)
    assert bool(jnp.all(jnp.isfinite(out_bf)))
    assert float(jnp.max(jnp.abs(out_bf - ref_b))) < 0.5  # loose: bf16 operands

    # --- 4) minimal-writeback path: bf16 output + padded return ------------
    out_pad = predictor_forward(xb, w1, b1, w2, b2, w3, b3,
                                out_dtype=jnp.bfloat16, return_padded=True)
    out_pad = jax.block_until_ready(out_pad)
    assert out_pad.shape == (_round_up(big_batch, 152), _round_up(n_outputs, 128))
    sliced = out_pad[:big_batch, :n_outputs].astype(jnp.float32)
    assert bool(jnp.all(jnp.isfinite(sliced)))
    assert float(jnp.max(jnp.abs(sliced - ref_b))) < 0.5  # loose: bf16 out+ops

    print("KERNEL_OK")
</pallas_src>

<mosaic_0001>
module attributes {stable_mosaic.version = 11 : i64} {
  func.func @predictor_kernel(%arg0: i32, %arg1: memref<8x32xf32, #tpu.memory_space<vmem>>, %arg2: memref<32x128xf32, #tpu.memory_space<vmem>>, %arg3: memref<1x128xf32, #tpu.memory_space<vmem>>, %arg4: memref<128x128xf32, #tpu.memory_space<vmem>>, %arg5: memref<1x128xf32, #tpu.memory_space<vmem>>, %arg6: memref<128x128xf32, #tpu.memory_space<vmem>>, %arg7: memref<1x128xf32, #tpu.memory_space<vmem>>, %arg8: memref<8x128xf32, #tpu.memory_space<vmem>>) attributes {dimension_semantics = [#tpu.dimension_semantics<parallel>], iteration_bounds = array<i64: 1>, scalar_prefetch = 0 : i64, scratch_operands = 0 : i64, tpu.core_type = #tpu.core_type<tc>, window_params = [{transform_indices = @transform_0, window_bounds = array<i64: 8, 32>}, {pipeline_mode = #tpu.pipeline_mode<synchronous>, transform_indices = @transform_1, window_bounds = array<i64: 32, 128>}, {pipeline_mode = #tpu.pipeline_mode<synchronous>, transform_indices = @transform_2, window_bounds = array<i64: 1, 128>}, {pipeline_mode = #tpu.pipeline_mode<synchronous>, transform_indices = @transform_3, window_bounds = array<i64: 128, 128>}, {pipeline_mode = #tpu.pipeline_mode<synchronous>, transform_indices = @transform_4, window_bounds = array<i64: 1, 128>}, {pipeline_mode = #tpu.pipeline_mode<synchronous>, transform_indices = @transform_5, window_bounds = array<i64: 128, 128>}, {pipeline_mode = #tpu.pipeline_mode<synchronous>, transform_indices = @transform_6, window_bounds = array<i64: 1, 128>}, {transform_indices = @transform_7, window_bounds = array<i64: 8, 128>}]} {
    %c0 = arith.constant 0 : index
    %c0_0 = arith.constant 0 : index
    %0 = vector.load %arg1[%c0, %c0_0] : memref<8x32xf32, #tpu.memory_space<vmem>>, vector<8x32xf32>
    %c0_1 = arith.constant 0 : index
    %c0_2 = arith.constant 0 : index
    %1 = vector.load %arg2[%c0_1, %c0_2] : memref<32x128xf32, #tpu.memory_space<vmem>>, vector<32x128xf32>
    %cst = arith.constant dense<0.000000e+00> : vector<8x128xf32>
    %2 = tpu.matmul %0, %1, %cst {dimension_numbers = #tpu.dot_dimension_numbers<[1], [0], [0], [1], [0, 0, 1, 1], [], []>} : vector<8x32xf32>, vector<32x128xf32>, vector<8x128xf32> -> vector<8x128xf32>
    %c0_3 = arith.constant 0 : index
    %c0_4 = arith.constant 0 : index
    %3 = vector.load %arg3[%c0_3, %c0_4] : memref<1x128xf32, #tpu.memory_space<vmem>>, vector<1x128xf32>
    %4 = vector.broadcast %3 : vector<1x128xf32> to vector<8x128xf32>
    %5 = arith.addf %2, %4 : vector<8x128xf32>
    %cst_5 = arith.constant 0.000000e+00 : f32
    %6 = vector.broadcast %cst_5 : f32 to vector<8x128xf32>
    %7 = arith.maximumf %5, %6 : vector<8x128xf32>
    %c0_6 = arith.constant 0 : index
    %c0_7 = arith.constant 0 : index
    %8 = vector.load %arg4[%c0_6, %c0_7] : memref<128x128xf32, #tpu.memory_space<vmem>>, vector<128x128xf32>
    %cst_8 = arith.constant dense<0.000000e+00> : vector<8x128xf32>
    %9 = tpu.matmul %7, %8, %cst_8 {dimension_numbers = #tpu.dot_dimension_numbers<[1], [0], [0], [1], [0, 0, 1, 1], [], []>} : vector<8x128xf32>, vector<128x128xf32>, vector<8x128xf32> -> vector<8x128xf32>
    %c0_9 = arith.constant 0 : index
    %c0_10 = arith.constant 0 : index
    %10 = vector.load %arg5[%c0_9, %c0_10] : memref<1x128xf32, #tpu.memory_space<vmem>>, vector<1x128xf32>
    %11 = vector.broadcast %10 : vector<1x128xf32> to vector<8x128xf32>
    %12 = arith.addf %9, %11 : vector<8x128xf32>
    %cst_11 = arith.constant 0.000000e+00 : f32
    %13 = vector.broadcast %cst_11 : f32 to vector<8x128xf32>
    %14 = arith.maximumf %12, %13 : vector<8x128xf32>
    %c0_12 = arith.constant 0 : index
    %c0_13 = arith.constant 0 : index
    %15 = vector.load %arg6[%c0_12, %c0_13] : memref<128x128xf32, #tpu.memory_space<vmem>>, vector<128x128xf32>
    %cst_14 = arith.constant dense<0.000000e+00> : vector<8x128xf32>
    %16 = tpu.matmul %14, %15, %cst_14 {dimension_numbers = #tpu.dot_dimension_numbers<[1], [0], [0], [1], [0, 0, 1, 1], [], []>} : vector<8x128xf32>, vector<128x128xf32>, vector<8x128xf32> -> vector<8x128xf32>
    %c0_15 = arith.constant 0 : index
    %c0_16 = arith.constant 0 : index
    %17 = vector.load %arg7[%c0_15, %c0_16] : memref<1x128xf32, #tpu.memory_space<vmem>>, vector<1x128xf32>
    %18 = vector.broadcast %17 : vector<1x128xf32> to vector<8x128xf32>
    %19 = arith.addf %16, %18 : vector<8x128xf32>
    %cst_17 = arith.constant dense<0xFF800000> : vector<8xf32>
    %20 = vector.multi_reduction <maximumf>, %19, %cst_17 [1] : vector<8x128xf32> to vector<8xf32>
    %21 = vector.shape_cast %20 : vector<8xf32> to vector<8x1xf32>
    %22 = vector.broadcast %21 : vector<8x1xf32> to vector<8x128xf32>
    %23 = arith.subf %19, %22 : vector<8x128xf32>
    %24 = math.exp %23 : vector<8x128xf32>
    %cst_18 = arith.constant dense<0.000000e+00> : vector<8xf32>
    %25 = vector.multi_reduction <add>, %24, %cst_18 [1] : vector<8x128xf32> to vector<8xf32>
    %26 = vector.shape_cast %25 : vector<8xf32> to vector<8x1xf32>
    %27 = math.log %26 : vector<8x1xf32>
    %28 = vector.broadcast %27 : vector<8x1xf32> to vector<8x128xf32>
    %29 = arith.subf %23, %28 : vector<8x128xf32>
    %c0_19 = arith.constant 0 : index
    %c0_20 = arith.constant 0 : index
    %30 = vector.load %arg8[%c0_19, %c0_20] : memref<8x128xf32, #tpu.memory_space<vmem>>, vector<8x128xf32>
    tpu.vector_store %arg8[%c0_19, %c0_20], %29 {strides = array<i32>} : memref<8x128xf32, #tpu.memory_space<vmem>>, vector<8x128xf32>,
    return
  }
  func.func @transform_0(%arg0: i32) -> (i32, i32) {
    %c0_i32 = arith.constant 0 : i32
    %c0_i32_0 = arith.constant 0 : i32
    return %arg0, %c0_i32 : i32, i32
  }
  func.func @transform_1(%arg0: i32) -> (i32, i32) {
    %c0_i32 = arith.constant 0 : i32
    %c0_i32_0 = arith.constant 0 : i32
    %c0_i32_1 = arith.constant 0 : i32
    return %c0_i32, %c0_i32_0 : i32, i32
  }
  func.func @transform_2(%arg0: i32) -> (i32, i32) {
    %c0_i32 = arith.constant 0 : i32
    %c0_i32_0 = arith.constant 0 : i32
    %c0_i32_1 = arith.constant 0 : i32
    return %c0_i32, %c0_i32_0 : i32, i32
  }
  func.func @transform_3(%arg0: i32) -> (i32, i32) {
    %c0_i32 = arith.constant 0 : i32
    %c0_i32_0 = arith.constant 0 : i32
    %c0_i32_1 = arith.constant 0 : i32
    return %c0_i32, %c0_i32_0 : i32, i32
  }
  func.func @transform_4(%arg0: i32) -> (i32, i32) {
    %c0_i32 = arith.constant 0 : i32
    %c0_i32_0 = arith.constant 0 : i32
    %c0_i32_1 = arith.constant 0 : i32
    return %c0_i32, %c0_i32_0 : i32, i32
  }
  func.func @transform_5(%arg0: i32) -> (i32, i32) {
    %c0_i32 = arith.constant 0 : i32
    %c0_i32_0 = arith.constant 0 : i32
    %c0_i32_1 = arith.constant 0 : i32
    return %c0_i32, %c0_i32_0 : i32, i32
  }
  func.func @transform_6(%arg0: i32) -> (i32, i32) {
    %c0_i32 = arith.constant 0 : i32
    %c0_i32_0 = arith.constant 0 : i32
    %c0_i32_1 = arith.constant 0 : i32
    return %c0_i32, %c0_i32_0 : i32, i32
  }
  func.func @transform_7(%arg0: i32) -> (i32, i32) {
    %c0_i32 = arith.constant 0 : i32
    %c0_i32_0 = arith.constant 0 : i32
    return %arg0, %c0_i32 : i32, i32
  }
}

</mosaic_0001>

<llo_original>
// kernel: tpu_custom_call.1
$region0: #{tpu_custom_call.1}
  #allocation0 [shape = 'u32[]', space=smem, size = 0x4, offset = 0x4, fixed_abs, tag = 'smem constant byte address 0x4 - core index']
  #allocation1 [shape = 'u32[72,128]{1,0:T(1,128)}', space=vmem, size = 0x9000, scoped, tag = 'internal scratch']
  %s0 = inlined_call_operand.hbm [shape: f32[8,32], index: 0, kind: input, shape index: {}]
  %s1 = inlined_call_operand.hbm [shape: f32[32,128], index: 1, kind: input, shape index: {}]
  %s2 = inlined_call_operand.vmem [shape: f32[1,128], index: 2, kind: input, shape index: {}]
  %s3 = inlined_call_operand.hbm [shape: f32[128,128], index: 3, kind: input, shape index: {}]
  %s4 = inlined_call_operand.vmem [shape: f32[1,128], index: 4, kind: input, shape index: {}]
  %s5 = inlined_call_operand.hbm [shape: f32[128,128], index: 5, kind: input, shape index: {}]
  %s6 = inlined_call_operand.vmem [shape: f32[1,128], index: 6, kind: input, shape index: {}]
  %s7 = inlined_call_operand.hbm [shape: f32[8,128], index: 7, kind: output, shape index: {}]
  %s8 = sld [smem:[#allocation0]]
  $region54: #{tpu_custom_call.1} parent=0
    _
  %s10 = ssub.s32 1, %s8
  %s11 = scalar_select 0, %s10, %s8
  $region1: #{tpu_custom_call.1} parent=0
    #allocation2 [shape = 'u8[4096]{0}', space=vmem, size = 0x1000, scoped, tag = 'input window, operand 0, single buffered']
    #allocation3 [shape = 's32[1]{0}', space=sflag, size = 0x4, scoped, tag = 'scoped memory for tpu_custom_call.1']
    #allocation4 [shape = 's32[1]{0}', space=sflag, size = 0x4, scoped, tag = 'scoped memory for tpu_custom_call.1']
    #allocation5 [shape = 'u8[16384]{0}', space=vmem, size = 0x4000, scoped, tag = 'input window, operand 1, single buffered']
    #allocation6 [shape = 's32[1]{0}', space=sflag, size = 0x4, scoped, tag = 'scoped memory for tpu_custom_call.1']
    #allocation7 [shape = 'u8[65536]{0}', space=vmem, size = 0x10000, scoped, tag = 'input window, operand 3, single buffered']
    #allocation8 [shape = 'u8[65536]{0}', space=vmem, size = 0x10000, scoped, tag = 'input window, operand 5, single buffered']
    #allocation9 [shape = 's32[1]{0}', space=sflag, size = 0x4, scoped, tag = 'scoped memory for tpu_custom_call.1']
    #allocation10 [shape = 'u8[4096]{0}', space=vmem, size = 0x1000, scoped, tag = 'output window, operand 0, single buffered']
    %12 = vsyncpa [#allocation3], 0
    %13 = vsyncpa [#allocation6], 0
    %14 = vsyncpa [#allocation9], 0
    %15 = vsyncpa [#allocation4], 0
    // Predicated region
    $region2: #{tpu_custom_call.1} parent=1 // pred_check
      _
    $region3: #{tpu_custom_call.1} parent=1 // pred_check_branch
      %17 = sbr.rel (0) target = $region5
    $region4: #{tpu_custom_call.1} parent=1 // pred_region
      %19 = vsyncadd [#allocation3], 0
      %s21 = sshll.u32 %s0, 4
      %s22 = int_to_ptr.hbm [resolvable:$true] %s21
      %s23 = sshll.u32 [#allocation2], 4
      %s24 = int_to_ptr.vmem [resolvable:$true] %s23
      %26 = dma.hbm_to_vmem [thread:$0]  %s22, 128, %s24, [#allocation3]
    $region5: #{tpu_custom_call.1} parent=1 // pred_fallthru
      _
    // Predicated region
    $region6: #{tpu_custom_call.1} parent=1 // pred_check
      _
    $region7: #{tpu_custom_call.1} parent=1 // pred_check_branch
      %28 = sbr.rel (0) target = $region9
    $region8: #{tpu_custom_call.1} parent=1 // pred_region
      %30 = vsyncadd [#allocation6], 0
      %s31 = sshll.u32 %s1, 4
      %s32 = int_to_ptr.hbm [resolvable:$true] %s31
      %s33 = sshll.u32 [#allocation5], 4
      %s34 = int_to_ptr.vmem [resolvable:$true] %s33
      %39 = dma.hbm_to_vmem [thread:$0]  %s32, 512, %s34, [#allocation6], 128, 128, 8
    $region9: #{tpu_custom_call.1} parent=1 // pred_fallthru
      _
    // Predicated region
    $region10: #{tpu_custom_call.1} parent=1 // pred_check
      _
    $region11: #{tpu_custom_call.1} parent=1 // pred_check_branch
      %41 = sbr.rel (0) target = $region13
    $region12: #{tpu_custom_call.1} parent=1 // pred_region
      _
    $region13: #{tpu_custom_call.1} parent=1 // pred_fallthru
      _
    // Predicated region
    $region14: #{tpu_custom_call.1} parent=1 // pred_check
      _
    $region15: #{tpu_custom_call.1} parent=1 // pred_check_branch
      %43 = sbr.rel (0) target = $region17
    $region16: #{tpu_custom_call.1} parent=1 // pred_region
      %45 = vsyncadd [#allocation6], 0
      %s46 = sshll.u32 %s3, 4
      %s47 = int_to_ptr.hbm [resolvable:$true] %s46
      %s48 = sshll.u32 [#allocation7], 4
      %s49 = int_to_ptr.vmem [resolvable:$true] %s48
      %54 = dma.hbm_to_vmem [thread:$0]  %s47, 2048, %s49, [#allocation6], 128, 128, 8
    $region17: #{tpu_custom_call.1} parent=1 // pred_fallthru
      _
    // Predicated region
    $region18: #{tpu_custom_call.1} parent=1 // pred_check
      _
    $region19: #{tpu_custom_call.1} parent=1 // pred_check_branch
      %56 = sbr.rel (0) target = $region21
    $region20: #{tpu_custom_call.1} parent=1 // pred_region
      _
    $region21: #{tpu_custom_call.1} parent=1 // pred_fallthru
      _
    // Predicated region
    $region22: #{tpu_custom_call.1} parent=1 // pred_check
      _
    $region23: #{tpu_custom_call.1} parent=1 // pred_check_branch
      %58 = sbr.rel (0) target = $region25
    $region24: #{tpu_custom_call.1} parent=1 // pred_region
      %60 = vsyncadd [#allocation9], 0
      %s61 = sshll.u32 %s5, 4
      %s62 = int_to_ptr.hbm [resolvable:$true] %s61
      %s63 = sshll.u32 [#allocation8], 4
      %s64 = int_to_ptr.vmem [resolvable:$true] %s63
      %69 = dma.hbm_to_vmem [thread:$0]  %s62, 2048, %s64, [#allocation9], 128, 128, 8
    $region25: #{tpu_custom_call.1} parent=1 // pred_fallthru
      _
    // Predicated region
    $region26: #{tpu_custom_call.1} parent=1 // pred_check
      _
    $region27: #{tpu_custom_call.1} parent=1 // pred_check_branch
      %71 = sbr.rel (0) target = $region29
    $region28: #{tpu_custom_call.1} parent=1 // pred_region
      _
    $region29: #{tpu_custom_call.1} parent=1 // pred_fallthru
      _
    // Predicated region
    $region30: #{tpu_custom_call.1} parent=1 // pred_check
      _
    $region31: #{tpu_custom_call.1} parent=1 // pred_check_branch
      %73 = sbr.rel (0) target = $region33
    $region32: #{tpu_custom_call.1} parent=1 // pred_region
      %75 = dma.done [#allocation3], 128
    $region33: #{tpu_custom_call.1} parent=1 // pred_fallthru
      _
    // Predicated region
    $region34: #{tpu_custom_call.1} parent=1 // pred_check
      _
    $region35: #{tpu_custom_call.1} parent=1 // pred_check_branch
      %77 = sbr.rel (0) target = $region37
    $region36: #{tpu_custom_call.1} parent=1 // pred_region
      %79 = dma.done [#allocation6], 512
    $region37: #{tpu_custom_call.1} parent=1 // pred_fallthru
      _
    // Predicated region
    $region38: #{tpu_custom_call.1} parent=1 // pred_check
      _
    $region39: #{tpu_custom_call.1} parent=1 // pred_check_branch
      %81 = sbr.rel (0) target = $region41
    $region40: #{tpu_custom_call.1} parent=1 // pred_region
      %83 = dma.done [#allocation6], 2048
    $region41: #{tpu_custom_call.1} parent=1 // pred_fallthru
      _
    // Predicated region
    $region42: #{tpu_custom_call.1} parent=1 // pred_check
      _
    $region43: #{tpu_custom_call.1} parent=1 // pred_check_branch
      %85 = sbr.rel (0) target = $region45
    $region44: #{tpu_custom_call.1} parent=1 // pred_region
      %87 = dma.done [#allocation9], 2048
    $region45: #{tpu_custom_call.1} parent=1 // pred_fallthru
      _
    %v88 = vld [vmem:[#allocation2] sm:$0xff]
    %v89 = vld [vmem:[#allocation5] sm:$0xff]
    %v90 = vld [vmem:[#allocation5 + $0x8] sm:$0xff]
    %v91 = vld [vmem:[#allocation5 + $0x10] sm:$0xff]
    %v92 = vld [vmem:[#allocation5 + $0x18] sm:$0xff]
    %v93 = vld [vmem:[%s2] sm:$0x1]
    %v95 = vperm.slane %v93, 0
    %vm97 = vcmask 261120
    %v99 = vsel %vm97, %v88, 0
    %101 = vmatpush.msra.mxu0 0.0
    %102 = vmatpush.msra.mxu0 0.0
    %103 = vmatpush.msra.mxu0 0.0
    %104 = vmatpush.msra.mxu0 0.0
    %105 = vmatpush.msra.mxu0 0.0
    %106 = vmatpush.msra.mxu0 0.0
    %107 = vmatpush.msra.mxu0 0.0
    %108 = vmatpush.msra.mxu0 0.0
    %109 = vmatpush.msra.mxu0 0.0
    %110 = vmatpush.msra.mxu0 0.0
    %111 = vmatpush.msra.mxu0 0.0
    %112 = vmatpush.msra.mxu0 0.0
    %113 = vmatpush.msra.mxu0 %v92
    %114 = vmatpush.msra.mxu0 %v91
    %115 = vmatpush.msra.mxu0 %v90
    %116 = vmatpush.msra.mxu0 %v89
    %117 = vmatmul.f32.gmra.mxu0 %v99
    %v118 = vpop.f32.mrf.mxu0
    %v119 = vadd.f32 %v95, %v118
    %120 = vdwg.mxu0
    %v121 = vmax.f32 %v119, 0.0
    %v122 = vld [vmem:[#allocation7] sm:$0xff]
    %v123 = vld [vmem:[#allocation7 + $0x8] sm:$0xff]
    %v124 = vld [vmem:[#allocation7 + $0x10] sm:$0xff]
    %v125 = vld [vmem:[#allocation7 + $0x18] sm:$0xff]
    %v126 = vld [vmem:[#allocation7 + $0x20] sm:$0xff]
    %v127 = vld [vmem:[#allocation7 + $0x28] sm:$0xff]
    %v128 = vld [vmem:[#allocation7 + $0x30] sm:$0xff]
    %v129 = vld [vmem:[#allocation7 + $0x38] sm:$0xff]
    %v130 = vld [vmem:[#allocation7 + $0x40] sm:$0xff]
    %v131 = vld [vmem:[#allocation7 + $0x48] sm:$0xff]
    %v132 = vld [vmem:[#allocation7 + $0x50] sm:$0xff]
    %v133 = vld [vmem:[#allocation7 + $0x58] sm:$0xff]
    %v134 = vld [vmem:[#allocation7 + $0x60] sm:$0xff]
    %v135 = vld [vmem:[#allocation7 + $0x68] sm:$0xff]
    %v136 = vld [vmem:[#allocation7 + $0x70] sm:$0xff]
    %v137 = vld [vmem:[#allocation7 + $0x78] sm:$0xff]
    %v138 = vld [vmem:[%s4] sm:$0x1]
    %v140 = vperm.slane %v138, 0
    %142 = vmatpush.msra.mxu0 %v137
    %143 = vmatpush.msra.mxu0 %v136
    %144 = vmatpush.msra.mxu0 %v135
    %145 = vmatpush.msra.mxu0 %v134
    %146 = vmatpush.msra.mxu0 %v133
    %147 = vmatpush.msra.mxu0 %v132
    %148 = vmatpush.msra.mxu0 %v131
    %149 = vmatpush.msra.mxu0 %v130
    %150 = vmatpush.msra.mxu0 %v129
    %151 = vmatpush.msra.mxu0 %v128
    %152 = vmatpush.msra.mxu0 %v127
    %153 = vmatpush.msra.mxu0 %v126
    %154 = vmatpush.msra.mxu0 %v125
    %155 = vmatpush.msra.mxu0 %v124
    %156 = vmatpush.msra.mxu0 %v123
    %157 = vmatpush.msra.mxu0 %v122
    %158 = vmatmul.f32.gmra.mxu0 %v121
    %v159 = vpop.f32.mrf.mxu0
    %v160 = vadd.f32 %v140, %v159
    %161 = vdwg.mxu0
    %v162 = vmax.f32 %v160, 0.0
    %v163 = vld [vmem:[#allocation8] sm:$0xff]
    %v164 = vld [vmem:[#allocation8 + $0x8] sm:$0xff]
    %v165 = vld [vmem:[#allocation8 + $0x10] sm:$0xff]
    %v166 = vld [vmem:[#allocation8 + $0x18] sm:$0xff]
    %v167 = vld [vmem:[#allocation8 + $0x20] sm:$0xff]
    %v168 = vld [vmem:[#allocation8 + $0x28] sm:$0xff]
    %v169 = vld [vmem:[#allocation8 + $0x30] sm:$0xff]
    %v170 = vld [vmem:[#allocation8 + $0x38] sm:$0xff]
    %v171 = vld [vmem:[#allocation8 + $0x40] sm:$0xff]
    %v172 = vld [vmem:[#allocation8 + $0x48] sm:$0xff]
    %v173 = vld [vmem:[#allocation8 + $0x50] sm:$0xff]
    %v174 = vld [vmem:[#allocation8 + $0x58] sm:$0xff]
    %v175 = vld [vmem:[#allocation8 + $0x60] sm:$0xff]
    %v176 = vld [vmem:[#allocation8 + $0x68] sm:$0xff]
    %v177 = vld [vmem:[#allocation8 + $0x70] sm:$0xff]
    %v178 = vld [vmem:[#allocation8 + $0x78] sm:$0xff]
    %v179 = vld [vmem:[%s6] sm:$0x1]
    %v181 = vperm.slane %v179, 0
    %183 = vmatpush.msra.mxu0 %v178
    %184 = vmatpush.msra.mxu0 %v177
    %185 = vmatpush.msra.mxu0 %v176
    %186 = vmatpush.msra.mxu0 %v175
    %187 = vmatpush.msra.mxu0 %v174
    %188 = vmatpush.msra.mxu0 %v173
    %189 = vmatpush.msra.mxu0 %v172
    %190 = vmatpush.msra.mxu0 %v171
    %191 = vmatpush.msra.mxu0 %v170
    %192 = vmatpush.msra.mxu0 %v169
    %193 = vmatpush.msra.mxu0 %v168
    %194 = vmatpush.msra.mxu0 %v167
    %195 = vmatpush.msra.mxu0 %v166
    %196 = vmatpush.msra.mxu0 %v165
    %197 = vmatpush.msra.mxu0 %v164
    %198 = vmatpush.msra.mxu0 %v163
    %199 = vmatmul.f32.gmra.mxu0 %v162
    %v200 = vpop.f32.mrf.mxu0
    %v201 = vadd.f32 %v181, %v200
    %202 = vdwg.mxu0
    %203 = vmax.xlane.f32.xlu0 %v201
    %v204 = vpop.xlane.xlu0 %203
    %v205 = vsub.f32 %v201, %v204
    %v206 = vmul.f32 %v205, 1.442695
    %v207 = vpow.pop %v206
    %208 = vadd.xlane.f32.xlu0 %v207
    %v209 = vpop.xlane.xlu0 %208
    %v210 = vlog2.pop %v209
    %v211 = vmul.f32 %v210, 0.6931472
    %v212 = vsub.f32 %v205, %v211
    %213 = vst [vmem:[#allocation10] sm:$0xff] %v212
    // Predicated region
    $region46: #{tpu_custom_call.1} parent=1 // pred_check
      _
    $region47: #{tpu_custom_call.1} parent=1 // pred_check_branch
      %215 = sbr.rel (0) target = $region49
    $region48: #{tpu_custom_call.1} parent=1 // pred_region
      %217 = vsyncadd [#allocation4], 0
      %s219 = sshll.u32 [#allocation10], 4
      %s220 = int_to_ptr.vmem [resolvable:$true] %s219
      %s221 = sshll.u32 %s7, 4
      %s222 = int_to_ptr.hbm [resolvable:$true] %s221
      %224 = dma.vmem_to_hbm [thread:$0]  %s220, 128, %s222, [#allocation4]
    $region49: #{tpu_custom_call.1} parent=1 // pred_fallthru
      _
    // Predicated region
    $region50: #{tpu_custom_call.1} parent=1 // pred_check
      _
    $region51: #{tpu_custom_call.1} parent=1 // pred_check_branch
      %226 = sbr.rel (0) target = $region53
    $region52: #{tpu_custom_call.1} parent=1 // pred_region
      %228 = dma.done [#allocation4], 128
    $region53: #{tpu_custom_call.1} parent=1 // pred_fallthru
      _
    %229 = vsyncpa [#allocation3], 1
    %230 = vsyncpa [#allocation6], 1
    %231 = vsyncpa [#allocation9], 1
    %232 = vsyncpa [#allocation4], 1

</llo_original>
